<compile_context>
chip_gen: v5e
topology: v5e:2x2
jax: 0.10.0
libtpu: 0.0.40
codegen_flags: <defaults>
</compile_context>

<pallas_src>
import functools

import jax
import jax.numpy as jnp
from jax.experimental import pallas as pl
from jax.experimental.pallas import tpu as pltpu


def _dot_nt(a, b):
    # (M, K) x (N, K) -> (M, N), contracting last dims ("NT" form) so the MXU
    # consumes the K-side tile without an explicit transpose / XLU relayout.
    return jax.lax.dot_general(
        a, b, (((1,), (1,)), ((), ())), preferred_element_type=jnp.float32)


def _softmax_pv_store(ar, ai, v_ref, out_ref, attn_ref):
    """Shared tail: |.|, softmax over keys, single packed PV matmul + stores."""
    mag = jnp.sqrt(ar * ar + ai * ai)
    m = jnp.max(mag, axis=-1, keepdims=True)
    e = jnp.exp(mag - m)
    s = jnp.sum(e, axis=-1, keepdims=True)
    r = pl.reciprocal(s, approx=True)          # EUP vrcp, nearly free
    r = r * (2.0 - s * r)                      # one Newton step -> ~f32 exact
    p = e * r

    attn_ref[...] = p
    # v_ref is lane-packed [vr | vi]; one matmul writes the packed out tile.
    out_ref[...] = jnp.dot(p, v_ref[...], preferred_element_type=jnp.float32)


def _csdpa_packed_kernel(q_ref, q2_ref, k_ref, v_ref, out_ref, attn_ref):
    """Small/medium-D path (lane-packed real/imag).

    q_ref  : (TQ, 2D)  = [qr | qi] / temperature
    q2_ref : (TQ, 2D)  = [qi | -qr] / temperature
    k_ref  : (Lk, 2D)  = [kr | ki]      (VMEM-resident across q tiles)
    v_ref  : (Lk, 2Dv) = [vr | vi]      (VMEM-resident across q tiles)
    out_ref: (TQ, 2Dv) packed [real | imag]
    attn_ref: (TQ, Lk)
    """
    # real(q @ conj(k)^T) = qr@kr^T + qi@ki^T ; imag = qi@kr^T - qr@ki^T
    ar = _dot_nt(q_ref[...], k_ref[...])
    ai = _dot_nt(q2_ref[...], k_ref[...])
    _softmax_pv_store(ar, ai, v_ref, out_ref, attn_ref)


def _csdpa_karatsuba_kernel(q_ref, k_ref, v_ref, out_ref, attn_ref):
    """Large-D path (D >= 128): 3-matmul Karatsuba conjugate product.

    q_ref : (2, TQ, D) stacked [qr, qi] / temperature
    k_ref : (2, Lk, D) stacked [kr, ki]
    v_ref : (Lk, 2Dv)  = [vr | vi]
    """
    qr, qi = q_ref[0], q_ref[1]
    kr, ki = k_ref[0], k_ref[1]
    p1 = _dot_nt(qr, kr)
    p2 = _dot_nt(qi, ki)
    p3 = _dot_nt(qr + qi, kr - ki)
    # real = p1 + p2 ; imag = p3 - p1 + p2
    _softmax_pv_store(p1 + p2, p3 - p1 + p2, v_ref, out_ref, attn_ref)


_Q_TILE_CANDIDATES = (1024, 512, 256, 128, 64, 32, 16, 8)


def _pick_q_tile(lq, step_bytes_fn, budget_bytes):
    """Largest q tile (Lq itself or a divisor of Lq) whose per-step footprint
    fits the VMEM budget."""
    cands = sorted(
        {lq} | {t for t in _Q_TILE_CANDIDATES if t < lq and lq % t == 0},
        reverse=True)
    for tq in cands:
        if step_bytes_fn(tq) <= budget_bytes:
            return tq
    # Nothing fits: take the smallest candidate and rely on the raised vmem
    # limit (see TODO about Lk-axis online softmax for very long Lk).
    return cands[-1]


@functools.partial(jax.jit, static_argnames=("temperature",))
def complex_sdpa(q, k, v, temperature):
    """q:(B,Lq,D), k:(B,Lk,D), v:(B,Lk,Dv) complex64. Returns (output, attn)."""
    B, Lq, D = q.shape
    _, Lk, _ = k.shape
    Dv = v.shape[-1]
    t = jnp.float32(temperature)

    # Split complex -> f32 and fold the 1/temperature scale into this mandatory
    # pack pass (fusible into the kernel inputs via allow_input_fusion).
    qr = (jnp.real(q) / t).astype(jnp.float32)
    qi = (jnp.imag(q) / t).astype(jnp.float32)
    v_pack = jnp.concatenate([jnp.real(v), jnp.imag(v)], axis=-1).astype(jnp.float32)

    use_karatsuba = D >= 128

    # Generation-aware VMEM budgeting (v5e/v6e 128 MiB, v7x 64 MiB per core).
    try:
        vmem_cap = int(getattr(pltpu.get_tpu_info(), "vmem_capacity_bytes",
                               64 << 20))
    except Exception:  # conservative fallback
        vmem_cap = 64 << 20
    budget = int(0.70 * vmem_cap)

    kv_resident = (Lk * 2 * D + Lk * 2 * Dv) * 4      # packed K + packed V, f32
    # K/V block index is constant across q tiles, so double-buffering only
    # helps at batch boundaries; single-buffer them once they are big enough
    # for the second buffer to matter.
    single_buf_kv = kv_resident > (4 << 20)
    kv_bufs = 1 if single_buf_kv else 2
    n_q_streams = 1 if use_karatsuba else 2           # q_pack (+ q2)

    def step_bytes(tq):
        q_b = n_q_streams * 2 * tq * 2 * D * 4        # double-buffered q tiles
        out_b = 2 * tq * 2 * Dv * 4                   # double-buffered out tile
        att_b = 2 * tq * Lk * 4                       # double-buffered attn tile
        return q_b + kv_bufs * kv_resident + out_b + att_b

    tq = _pick_q_tile(Lq, step_bytes, budget)
    n_q = Lq // tq

    vmem_limit = int(min(max(int(1.5 * step_bytes(tq)), 32 << 20),
                         int(0.9 * vmem_cap)))

    def kv_spec(shape, index_map):
        if single_buf_kv:
            return pl.BlockSpec(shape, index_map, pipeline_mode=pl.Buffered(1))
        return pl.BlockSpec(shape, index_map)

    if use_karatsuba:
        q_ri = jnp.stack([qr, qi], axis=1)                             # (B,2,Lq,D)
        k_ri = jnp.stack([jnp.real(k), jnp.imag(k)], axis=1).astype(jnp.float32)
        kernel = _csdpa_karatsuba_kernel
        operands = (q_ri, k_ri, v_pack)
        in_specs = [
            pl.BlockSpec((None, 2, tq, D), lambda b, qt: (b, 0, qt, 0)),
            kv_spec((None, 2, Lk, D), lambda b, qt: (b, 0, 0, 0)),
            kv_spec((None, Lk, 2 * Dv), lambda b, qt: (b, 0, 0)),
        ]
    else:
        q_pack = jnp.concatenate([qr, qi], axis=-1)                    # (B,Lq,2D)
        q2_pack = jnp.concatenate([qi, -qr], axis=-1)                  # (B,Lq,2D)
        k_pack = jnp.concatenate(
            [jnp.real(k), jnp.imag(k)], axis=-1).astype(jnp.float32)   # (B,Lk,2D)
        kernel = _csdpa_packed_kernel
        operands = (q_pack, q2_pack, k_pack, v_pack)
        in_specs = [
            pl.BlockSpec((None, tq, 2 * D), lambda b, qt: (b, qt, 0)),
            pl.BlockSpec((None, tq, 2 * D), lambda b, qt: (b, qt, 0)),
            # K / V: block index constant along the q-tile axis -> VMEM-resident.
            kv_spec((None, Lk, 2 * D), lambda b, qt: (b, 0, 0)),
            kv_spec((None, Lk, 2 * Dv), lambda b, qt: (b, 0, 0)),
        ]

    out_packed, attn = pl.pallas_call(
        kernel,
        out_shape=(
            jax.ShapeDtypeStruct((B, Lq, 2 * Dv), jnp.float32),
            jax.ShapeDtypeStruct((B, Lq, Lk), jnp.float32),
        ),
        grid_spec=pltpu.PrefetchScalarGridSpec(
            num_scalar_prefetch=0,
            grid=(B, n_q),
            in_specs=in_specs,
            out_specs=[
                pl.BlockSpec((None, tq, 2 * Dv), lambda b, qt: (b, qt, 0)),
                pl.BlockSpec((None, tq, Lk), lambda b, qt: (b, qt, 0)),
            ],
        ),
        compiler_params=pltpu.CompilerParams(
            dimension_semantics=("parallel", "parallel"),
            vmem_limit_bytes=vmem_limit,
            allow_input_fusion=[True] * len(operands),
        ),
    )(*operands)

    output = jax.lax.complex(out_packed[..., :Dv], out_packed[..., Dv:])
    return output.astype(jnp.complex64), attn


def _reference(q, k, v, temperature):
    attn_c = jnp.einsum("bqd,bkd->bqk", q / temperature, jnp.conj(k))
    attn = jax.nn.softmax(jnp.abs(attn_c), axis=-1)
    out = jax.lax.complex(
        jnp.einsum("bqk,bkd->bqd", attn, jnp.real(v)),
        jnp.einsum("bqk,bkd->bqd", attn, jnp.imag(v)))
    return out.astype(jnp.complex64), attn


if __name__ == "__main__":
    key = jax.random.PRNGKey(0)
    B, Lq, Lk, D, Dv = 2, 8, 8, 32, 32
    temperature = float(D) ** 0.5

    ks = jax.random.split(key, 6)
    q = (jax.random.normal(ks[0], (B, Lq, D), jnp.float32)
         + 1j * jax.random.normal(ks[1], (B, Lq, D), jnp.float32)).astype(jnp.complex64)
    k = (jax.random.normal(ks[2], (B, Lk, D), jnp.float32)
         + 1j * jax.random.normal(ks[3], (B, Lk, D), jnp.float32)).astype(jnp.complex64)
    v = (jax.random.normal(ks[4], (B, Lk, Dv), jnp.float32)
         + 1j * jax.random.normal(ks[5], (B, Lk, Dv), jnp.float32)).astype(jnp.complex64)

    out, attn = complex_sdpa(q, k, v, temperature)
    jax.block_until_ready((out, attn))

    ref_out, ref_attn = _reference(q, k, v, temperature)
    assert jnp.allclose(attn, ref_attn, atol=1e-5, rtol=1e-5)
    assert jnp.allclose(out, ref_out, atol=1e-5, rtol=1e-5)

    print("KERNEL_OK")
</pallas_src>

<mosaic_0001>
module attributes {stable_mosaic.version = 11 : i64} {
  func.func @_csdpa_packed_kernel(%arg0: i32, %arg1: i32, %arg2: memref<1x8x64xf32, #tpu.memory_space<vmem>>, %arg3: memref<1x8x64xf32, #tpu.memory_space<vmem>>, %arg4: memref<1x8x64xf32, #tpu.memory_space<vmem>>, %arg5: memref<1x8x64xf32, #tpu.memory_space<vmem>>, %arg6: memref<1x8x64xf32, #tpu.memory_space<vmem>>, %arg7: memref<1x8x8xf32, #tpu.memory_space<vmem>>) attributes {dimension_semantics = [#tpu.dimension_semantics<parallel>, #tpu.dimension_semantics<parallel>], iteration_bounds = array<i64: 2, 1>, scalar_prefetch = 0 : i64, scratch_operands = 0 : i64, tpu.core_type = #tpu.core_type<tc>, window_params = [{transform_indices = @transform_0, window_bounds = array<i64: 1, 8, 64>}, {transform_indices = @transform_1, window_bounds = array<i64: 1, 8, 64>}, {transform_indices = @transform_2, window_bounds = array<i64: 1, 8, 64>}, {transform_indices = @transform_3, window_bounds = array<i64: 1, 8, 64>}, {transform_indices = @transform_4, window_bounds = array<i64: 1, 8, 64>}, {transform_indices = @transform_5, window_bounds = array<i64: 1, 8, 8>}]} {
    %c0 = arith.constant 0 : index
    %c0_0 = arith.constant 0 : index
    %c0_1 = arith.constant 0 : index
    %0 = vector.load %arg2[%c0, %c0_0, %c0_1] : memref<1x8x64xf32, #tpu.memory_space<vmem>>, vector<1x8x64xf32>
    %1 = vector.shape_cast %0 : vector<1x8x64xf32> to vector<8x64xf32>
    %c0_2 = arith.constant 0 : index
    %c0_3 = arith.constant 0 : index
    %c0_4 = arith.constant 0 : index
    %2 = vector.load %arg4[%c0_2, %c0_3, %c0_4] : memref<1x8x64xf32, #tpu.memory_space<vmem>>, vector<1x8x64xf32>
    %3 = vector.shape_cast %2 : vector<1x8x64xf32> to vector<8x64xf32>
    %cst = arith.constant dense<0.000000e+00> : vector<8x8xf32>
    %4 = tpu.matmul %1, %3, %cst {dimension_numbers = #tpu.dot_dimension_numbers<[1], [1], [0], [0], [0, 0, 1, 0], [], []>} : vector<8x64xf32>, vector<8x64xf32>, vector<8x8xf32> -> vector<8x8xf32>
    %c0_5 = arith.constant 0 : index
    %c0_6 = arith.constant 0 : index
    %c0_7 = arith.constant 0 : index
    %5 = vector.load %arg3[%c0_5, %c0_6, %c0_7] : memref<1x8x64xf32, #tpu.memory_space<vmem>>, vector<1x8x64xf32>
    %6 = vector.shape_cast %5 : vector<1x8x64xf32> to vector<8x64xf32>
    %c0_8 = arith.constant 0 : index
    %c0_9 = arith.constant 0 : index
    %c0_10 = arith.constant 0 : index
    %7 = vector.load %arg4[%c0_8, %c0_9, %c0_10] : memref<1x8x64xf32, #tpu.memory_space<vmem>>, vector<1x8x64xf32>
    %8 = vector.shape_cast %7 : vector<1x8x64xf32> to vector<8x64xf32>
    %cst_11 = arith.constant dense<0.000000e+00> : vector<8x8xf32>
    %9 = tpu.matmul %6, %8, %cst_11 {dimension_numbers = #tpu.dot_dimension_numbers<[1], [1], [0], [0], [0, 0, 1, 0], [], []>} : vector<8x64xf32>, vector<8x64xf32>, vector<8x8xf32> -> vector<8x8xf32>
    %10 = arith.mulf %4, %4 : vector<8x8xf32>
    %11 = arith.mulf %9, %9 : vector<8x8xf32>
    %12 = arith.addf %10, %11 : vector<8x8xf32>
    %13 = math.sqrt %12 : vector<8x8xf32>
    %cst_12 = arith.constant dense<0xFF800000> : vector<8xf32>
    %14 = vector.multi_reduction <maximumf>, %13, %cst_12 [1] : vector<8x8xf32> to vector<8xf32>
    %15 = vector.shape_cast %14 : vector<8xf32> to vector<8x1xf32>
    %16 = vector.broadcast %15 : vector<8x1xf32> to vector<8x8xf32>
    %17 = arith.subf %13, %16 : vector<8x8xf32>
    %18 = math.exp %17 : vector<8x8xf32>
    %cst_13 = arith.constant dense<0.000000e+00> : vector<8xf32>
    %19 = vector.multi_reduction <add>, %18, %cst_13 [1] : vector<8x8xf32> to vector<8xf32>
    %20 = vector.shape_cast %19 : vector<8xf32> to vector<8x1xf32>
    %21 = tpu.reciprocal %20 {approx = true} : vector<8x1xf32> -> vector<8x1xf32>
    %22 = arith.mulf %20, %21 : vector<8x1xf32>
    %cst_14 = arith.constant 2.000000e+00 : f32
    %23 = vector.broadcast %cst_14 : f32 to vector<8x1xf32>
    %24 = arith.subf %23, %22 : vector<8x1xf32>
    %25 = arith.mulf %21, %24 : vector<8x1xf32>
    %26 = vector.broadcast %25 : vector<8x1xf32> to vector<8x8xf32>
    %27 = arith.mulf %18, %26 : vector<8x8xf32>
    %c0_15 = arith.constant 0 : index
    %c0_16 = arith.constant 0 : index
    %c0_17 = arith.constant 0 : index
    %28 = vector.load %arg7[%c0_15, %c0_16, %c0_17] : memref<1x8x8xf32, #tpu.memory_space<vmem>>, vector<1x8x8xf32>
    %29 = vector.shape_cast %28 : vector<1x8x8xf32> to vector<8x8xf32>
    %30 = vector.shape_cast %27 : vector<8x8xf32> to vector<1x8x8xf32>
    tpu.vector_store %arg7[%c0_15, %c0_16, %c0_17], %30 {strides = array<i32>} : memref<1x8x8xf32, #tpu.memory_space<vmem>>, vector<1x8x8xf32>,
    %c0_18 = arith.constant 0 : index
    %c0_19 = arith.constant 0 : index
    %c0_20 = arith.constant 0 : index
    %31 = vector.load %arg5[%c0_18, %c0_19, %c0_20] : memref<1x8x64xf32, #tpu.memory_space<vmem>>, vector<1x8x64xf32>
    %32 = vector.shape_cast %31 : vector<1x8x64xf32> to vector<8x64xf32>
    %cst_21 = arith.constant dense<0.000000e+00> : vector<8x64xf32>
    %33 = tpu.matmul %27, %32, %cst_21 {dimension_numbers = #tpu.dot_dimension_numbers<[1], [0], [0], [1], [0, 0, 1, 1], [], []>} : vector<8x8xf32>, vector<8x64xf32>, vector<8x64xf32> -> vector<8x64xf32>
    %c0_22 = arith.constant 0 : index
    %c0_23 = arith.constant 0 : index
    %c0_24 = arith.constant 0 : index
    %34 = vector.load %arg6[%c0_22, %c0_23, %c0_24] : memref<1x8x64xf32, #tpu.memory_space<vmem>>, vector<1x8x64xf32>
    %35 = vector.shape_cast %34 : vector<1x8x64xf32> to vector<8x64xf32>
    %36 = vector.shape_cast %33 : vector<8x64xf32> to vector<1x8x64xf32>
    tpu.vector_store %arg6[%c0_22, %c0_23, %c0_24], %36 {strides = array<i32>} : memref<1x8x64xf32, #tpu.memory_space<vmem>>, vector<1x8x64xf32>,
    return
  }
  func.func @transform_0(%arg0: i32, %arg1: i32) -> (i32, i32, i32) {
    %c0_i32 = arith.constant 0 : i32
    %c0_i32_0 = arith.constant 0 : i32
    return %arg0, %arg1, %c0_i32 : i32, i32, i32
  }
  func.func @transform_1(%arg0: i32, %arg1: i32) -> (i32, i32, i32) {
    %c0_i32 = arith.constant 0 : i32
    %c0_i32_0 = arith.constant 0 : i32
    return %arg0, %arg1, %c0_i32 : i32, i32, i32
  }
  func.func @transform_2(%arg0: i32, %arg1: i32) -> (i32, i32, i32) {
    %c0_i32 = arith.constant 0 : i32
    %c0_i32_0 = arith.constant 0 : i32
    %c0_i32_1 = arith.constant 0 : i32
    return %arg0, %c0_i32, %c0_i32_0 : i32, i32, i32
  }
  func.func @transform_3(%arg0: i32, %arg1: i32) -> (i32, i32, i32) {
    %c0_i32 = arith.constant 0 : i32
    %c0_i32_0 = arith.constant 0 : i32
    %c0_i32_1 = arith.constant 0 : i32
    return %arg0, %c0_i32, %c0_i32_0 : i32, i32, i32
  }
  func.func @transform_4(%arg0: i32, %arg1: i32) -> (i32, i32, i32) {
    %c0_i32 = arith.constant 0 : i32
    %c0_i32_0 = arith.constant 0 : i32
    return %arg0, %arg1, %c0_i32 : i32, i32, i32
  }
  func.func @transform_5(%arg0: i32, %arg1: i32) -> (i32, i32, i32) {
    %c0_i32 = arith.constant 0 : i32
    %c0_i32_0 = arith.constant 0 : i32
    return %arg0, %arg1, %c0_i32 : i32, i32, i32
  }
}

</mosaic_0001>

<llo_original>
// kernel: custom-call.1
$region0: #{custom-call.1}
  %s0 = inlined_call_operand.hbm [shape: c64[2,8,32], index: 0, kind: input, shape index: {}]
  %s1 = inlined_call_operand.vmem [shape: f32[2,8,32], index: 1, kind: output, shape index: {}]
  %s2 = scalar_lea.hbm %s0, 16
  $region1: #{custom-call.1} parent=0
    #allocation0 [shape = 's32[1]{0}', space=sflag, size = 0x4, scoped, tag = 'scoped memory for custom-call.1']
    %3 = vsyncpa [#allocation0], 0
    %s5 = sshll.u32 %s2, 4
    %s6 = int_to_ptr.hbm [resolvable:$true] %s5
    %s7 = sshll.u32 %s1, 4
    %s8 = int_to_ptr.vmem [resolvable:$true] %s7
    %10 = dma.hbm_to_vmem [thread:$0]  %s6, 256, %s8, [#allocation0]
    %12 = dma.done [#allocation0], 256
    %13 = vsyncpa [#allocation0], 1

// kernel: custom-call
$region0: #{custom-call}
  %s0 = inlined_call_operand.hbm [shape: c64[2,8,32], index: 0, kind: input, shape index: {}]
  %s1 = inlined_call_operand.vmem [shape: f32[2,8,32], index: 1, kind: output, shape index: {}]
  $region1: #{custom-call} parent=0
    #allocation0 [shape = 's32[1]{0}', space=sflag, size = 0x4, scoped, tag = 'scoped memory for custom-call']
    %2 = vsyncpa [#allocation0], 0
    %s4 = sshll.u32 %s0, 4
    %s5 = int_to_ptr.hbm [resolvable:$true] %s4
    %s6 = sshll.u32 %s1, 4
    %s7 = int_to_ptr.vmem [resolvable:$true] %s6
    %9 = dma.hbm_to_vmem [thread:$0]  %s5, 256, %s7, [#allocation0]
    %11 = dma.done [#allocation0], 256
    %12 = vsyncpa [#allocation0], 1

// kernel: custom-call.6
$region0: #{custom-call.6}
  %s0 = inlined_call_operand.vmem [shape: f32[2,8,32], index: 0, kind: input, shape index: {}]
  %s1 = inlined_call_operand.vmem [shape: f32[2,8,32], index: 1, kind: input, shape index: {}]
  %s2 = inlined_call_operand.hbm [shape: c64[2,8,32], index: 2, kind: output, shape index: {}]
  %s3 = scalar_lea.hbm %s2, 16
  $region1: #{custom-call.6} parent=0
    #allocation0 [shape = 's32[1]{0}', space=sflag, size = 0x4, scoped, tag = 'scoped memory for custom-call.6']
    %4 = vsyncpa [#allocation0], 0
    %s6 = sshll.u32 %s0, 4
    %s7 = int_to_ptr.vmem [resolvable:$true] %s6
    %s8 = sshll.u32 %s2, 4
    %s9 = int_to_ptr.hbm [resolvable:$true] %s8
    %11 = dma.vmem_to_hbm [thread:$0]  %s7, 256, %s9, [#allocation0]
    %13 = dma.done [#allocation0], 256
    %14 = vsyncpa [#allocation0], 1
  $region2: #{custom-call.6} parent=0
    #allocation1 [shape = 's32[1]{0}', space=sflag, size = 0x4, scoped, tag = 'scoped memory for custom-call.6']
    %15 = vsyncpa [#allocation1], 0
    %s17 = sshll.u32 %s1, 4
    %s18 = int_to_ptr.vmem [resolvable:$true] %s17
    %s19 = sshll.u32 %s3, 4
    %s20 = int_to_ptr.hbm [resolvable:$true] %s19
    %22 = dma.vmem_to_hbm [thread:$0]  %s18, 256, %s20, [#allocation1]
    %24 = dma.done [#allocation1], 256
    %25 = vsyncpa [#allocation1], 1

// kernel: complex_sdpa.2
$region0: #{complex_sdpa.2}
  #allocation0 [shape = 'u32[]', space=smem, size = 0x4, offset = 0x4, fixed_abs, tag = 'smem constant byte address 0x4 - core index']
  #allocation1 [shape = 'u32[72,128]{1,0:T(1,128)}', space=vmem, size = 0x9000, scoped, tag = 'internal scratch']
  #allocation2 [shape = 'u32[2048]{0}', space=vmem, size = 0x2000, scoped, tag = 'scoped memory for complex_sdpa.2']
  #allocation3 [shape = 'u32[2048]{0}', space=vmem, size = 0x2000, scoped, tag = 'scoped memory for complex_sdpa.2']
  #allocation4 [shape = 'u32[2048]{0}', space=vmem, size = 0x2000, scoped, tag = 'scoped memory for complex_sdpa.2']
  #allocation5 [shape = 'u32[2048]{0}', space=vmem, size = 0x2000, scoped, tag = 'scoped memory for complex_sdpa.2']
  #allocation6 [shape = 'u32[2048]{0}', space=vmem, size = 0x2000, scoped, tag = 'scoped memory for complex_sdpa.2']
  #allocation7 [shape = 'u32[2048]{0}', space=vmem, size = 0x2000, scoped, tag = 'scoped memory for complex_sdpa.2']
  #allocation8 [shape = 'u32[2048]{0}', space=vmem, size = 0x2000, scoped, tag = 'scoped memory for complex_sdpa.2']
  #allocation9 [shape = 'u32[2048]{0}', space=vmem, size = 0x2000, scoped, tag = 'scoped memory for complex_sdpa.2']
  #allocation10 [shape = 'u32[2048]{0}', space=vmem, size = 0x2000, scoped, tag = 'scoped memory for complex_sdpa.2']
  #allocation11 [shape = 'u32[2048]{0}', space=vmem, size = 0x2000, scoped, tag = 'scoped memory for complex_sdpa.2']
  #allocation12 [shape = 'u32[2048]{0}', space=vmem, size = 0x2000, scoped, tag = 'scoped memory for complex_sdpa.2']
  #allocation13 [shape = 'u32[2048]{0}', space=vmem, size = 0x2000, scoped, tag = 'scoped memory for complex_sdpa.2']
  #allocation14 [shape = 'u32[2048]{0}', space=vmem, size = 0x2000, scoped, tag = 'scoped memory for complex_sdpa.2']
  #allocation15 [shape = 'u32[2048]{0}', space=vmem, size = 0x2000, scoped, tag = 'scoped memory for complex_sdpa.2']
  #allocation16 [shape = 'u32[2048]{0}', space=vmem, size = 0x2000, scoped, tag = 'scoped memory for complex_sdpa.2']
  #allocation17 [shape = 'u32[2048]{0}', space=vmem, size = 0x2000, scoped, tag = 'scoped memory for complex_sdpa.2']
  #allocation18 [shape = 'u32[2048]{0}', space=vmem, size = 0x2000, scoped, tag = 'scoped memory for complex_sdpa.2']
  #allocation19 [shape = 'u32[2048]{0}', space=vmem, size = 0x2000, scoped, tag = 'scoped memory for complex_sdpa.2']
  #allocation20 [shape = 'u32[2048]{0}', space=vmem, size = 0x2000, scoped, tag = 'scoped memory for complex_sdpa.2']
  #allocation21 [shape = 'u32[2048]{0}', space=vmem, size = 0x2000, scoped, tag = 'scoped memory for complex_sdpa.2']
  #allocation22 [shape = 'u32[2048]{0}', space=vmem, size = 0x2000, scoped, tag = 'scoped memory for complex_sdpa.2']
  #allocation23 [shape = 'u32[2048]{0}', space=vmem, size = 0x2000, scoped, tag = 'scoped memory for complex_sdpa.2']
  #allocation24 [shape = 'u32[2048]{0}', space=vmem, size = 0x2000, scoped, tag = 'scoped memory for complex_sdpa.2']
  #allocation25 [shape = 'u32[2048]{0}', space=vmem, size = 0x2000, scoped, tag = 'scoped memory for complex_sdpa.2']
  #allocation26 [shape = 'u32[2048]{0}', space=vmem, size = 0x2000, scoped, tag = 'scoped memory for complex_sdpa.2']
  #allocation27 [shape = 'u32[2048]{0}', space=vmem, size = 0x2000, scoped, tag = 'scoped memory for complex_sdpa.2']
  #allocation28 [shape = 'u32[2048]{0}', space=vmem, size = 0x2000, scoped, tag = 'scoped memory for complex_sdpa.2']
  #allocation29 [shape = 'u32[2048]{0}', space=vmem, size = 0x2000, scoped, tag = 'scoped memory for complex_sdpa.2']
  #allocation30 [shape = 'u32[2048]{0}', space=vmem, size = 0x2000, scoped, tag = 'scoped memory for complex_sdpa.2']
  #allocation31 [shape = 'u32[2048]{0}', space=vmem, size = 0x2000, scoped, tag = 'scoped memory for complex_sdpa.2']
  #allocation32 [shape = 'u32[2048]{0}', space=vmem, size = 0x2000, scoped, tag = 'scoped memory for complex_sdpa.2']
  #allocation33 [shape = 'u32[2048]{0}', space=vmem, size = 0x2000, scoped, tag = 'scoped memory for complex_sdpa.2']
  #allocation34 [shape = 'u32[2048]{0}', space=vmem, size = 0x2000, scoped, tag = 'scoped memory for complex_sdpa.2']
  #allocation35 [shape = 'u32[2048]{0}', space=vmem, size = 0x2000, scoped, tag = 'scoped memory for complex_sdpa.2']
  #allocation36 [shape = 'u32[2048]{0}', space=vmem, size = 0x2000, scoped, tag = 'scoped memory for complex_sdpa.2']
  #allocation37 [shape = 'u32[2048]{0}', space=vmem, size = 0x2000, scoped, tag = 'scoped memory for complex_sdpa.2']
  #allocation38 [shape = 'u32[2048]{0}', space=vmem, size = 0x2000, scoped, tag = 'scoped memory for complex_sdpa.2']
  #allocation39 [shape = 'u32[2048]{0}', space=vmem, size = 0x2000, scoped, tag = 'scoped memory for complex_sdpa.2']
  #allocation40 [shape = 'u32[2048]{0}', space=vmem, size = 0x2000, scoped, tag = 'scoped memory for complex_sdpa.2']
  #allocation41 [shape = 'u32[2048]{0}', space=vmem, size = 0x2000, scoped, tag = 'scoped memory for complex_sdpa.2']
  %s0 = inlined_call_operand.vmem [shape: f32[2,8,32], index: 0, kind: input, shape index: {}]
  %s1 = inlined_call_operand.<no memory space> [shape: f32[], index: 1, kind: input, shape index: {}]
  %s2 = inlined_call_operand.vmem [shape: f32[2,8,32], index: 2, kind: input, shape index: {}]
  %s3 = inlined_call_operand.vmem [shape: f32[2,8,32], index: 3, kind: input, shape index: {}]
  %s4 = inlined_call_operand.vmem [shape: f32[2,8,32], index: 4, kind: input, shape index: {}]
  %s5 = inlined_call_operand.vmem [shape: f32[2,8,32], index: 5, kind: input, shape index: {}]
  %s6 = inlined_call_operand.vmem [shape: f32[2,8,32], index: 6, kind: input, shape index: {}]
  %s7 = inlined_call_operand.vmem [shape: f32[2,8,32], index: 7, kind: input, shape index: {}]
  %s8 = inlined_call_operand.vmem [shape: f32[2,8,64], index: 8, kind: output, shape index: {0}]
  %s9 = inlined_call_operand.hbm [shape: f32[2,8,8], index: 9, kind: output, shape index: {1}]
  %10 = xla_tuple %s8, %s9
  %s11 = sld [smem:[#allocation0]]
  $region73: #{complex_sdpa.2} parent=0
    _
  %s13 = ssub.s32 1, %s11
  %s14 = scalar_select 0, %s13, %s11
  %v15 = vstv %s1
  %v16 = vstv %s1
  %v17 = vstv %s1
  %v18 = vstv %s1
  %v19 = vstv %s1
  %v20 = vstv %s1
  %v21 = vstv %s1
  %v22 = vstv %s1
  $region1: #{complex_sdpa.2} parent=0
    #allocation42 [shape = 'u8[8192]{0}', space=vmem, size = 0x2000, scoped, tag = 'output window, operand 1']
    #allocation43 [shape = 's32[2]{0}', space=sflag, size = 0x8, scoped, tag = 'scoped memory for complex_sdpa.2']
    %23 = vsyncpa [#allocation43], 0
    %s24 = scalar_lea.sflag [#allocation43], 1
    %25 = vsyncpa %s24, 0
    loop: start=0, step=1, limit=4
    $region2: #{complex_sdpa.2} parent=1 // loop_pre_header
      _
    $region3: #{complex_sdpa.2} parent=1 // loop_header
      %s27 = sphi 0, %s31
      %p28 = scmp.ge.s32.totalorder %s27, 4
      %s34 = sphi 0, %s46
      %s35 = sphi 0, %s42
      %s36 = sphi 0, %s34
      %s37 = sphi 0, %s35
      %s38 = sphi 0, %s36
      %s39 = sphi 0, %s37
      %s55 = sphi 0, %s57
      %s58 = sphi 0, %s55
      %s59 = sphi 0, %s58
      %s75 = sphi 0, %s59
      %s83 = sphi 0, %s85
      %s86 = sphi 0, %s83
      %s87 = sphi 0, %s86
      %s103 = sphi 0, %s87
      %s115 = sphi 0, %s117
      %s118 = sphi 0, %s115
      %s119 = sphi 0, %s118
      %s135 = sphi 0, %s119
      %s143 = sphi 0, %s145
      %s146 = sphi 0, %s143
      %s147 = sphi 0, %s146
      %s163 = sphi 0, %s147
      %s173 = sphi 0, %s175
      %s176 = sphi 0, %s173
      %s177 = sphi 0, %s176
      %s193 = sphi 0, %s177
      %s199 = sphi 0, %s201
      %s202 = sphi 0, %s199
      %s203 = sphi 0, %s202
      %s219 = sphi 0, %s203
      %s229 = sphi 0, %s231
      %s232 = sphi 0, %s229
      %s233 = sphi 0, %s232
      %s249 = sphi 0, %s233
      %s255 = sphi 0, %s257
      %s258 = sphi 0, %s255
      %s259 = sphi 0, %s258
      %s275 = sphi 0, %s259
      %s283 = sphi 0, %s285
      %s286 = sphi 0, %s283
      %s287 = sphi 0, %s286
      %s303 = sphi 0, %s287
      %s311 = sphi 0, %s313
      %s314 = sphi 0, %s311
      %s315 = sphi 0, %s314
      %s331 = sphi 0, %s315
    $region4: #{complex_sdpa.2} parent=1 // loop_header_branch
      %30 = sbr.rel (%p28) target = $region8
    $region5: #{complex_sdpa.2} parent=1 // loop_body
      %s32 = ssub.s32 %s27, 1
      %s33 = ssub.s32 %s27, 2
      %s40 = sadd.s32 1, %s35
      %p41 = scmp.ge.s32.totalorder %s40, 1
      %s42 = scalar_select %p41, 0, %s40
      %s43 = sadd.s32 1, %s34
      %s44 = scalar_select %p41, %s43, %s34
      %p45 = scmp.ge.s32.totalorder %s44, 2
      %s46 = scalar_select %p45, 0, %s44
      %s49 = ssub.s32 %s34, %s46
      %s50 = ssub.s32 %s35, %s42
      %s51 = sor.u32 %s49, %s50
      %s52 = ssub.s32 0, 0
      %s53 = sor.u32 %s51, %s52
      %p54 = scmp.eq.s32.totalorder %s53, 0
      %s56 = sadd.s32 %s55, 1
      %s57 = scalar_select %p54, %s55, %s56
      %p60 = pneg %p54
      %p61 = scmp.eq.s32.totalorder %s27, 1
      %p62 = por %p60, %p61
      %p63 = scmp.ne.s32.totalorder %s55, %s58
      %p64 = scmp.eq.s32.totalorder %s27, 0
      %p65 = por %p63, %p64
      %p66 = scmp.ne.s32.totalorder %s55, %s58
      %p67 = scmp.eq.s32.totalorder %s32, 1
      %p68 = por %p66, %p67
      %p69 = scmp.ne.s32.totalorder %s58, %s59
      %p70 = scmp.eq.s32.totalorder %s32, 0
      %p71 = por %p69, %p70
      %p72 = scmp.ne.s32.totalorder %s58, %s59
      %p73 = scmp.eq.s32.totalorder %s33, 1
      %p74 = por %p72, %p73
      %p76 = scmp.ne.s32.totalorder %s59, %s75
      %p77 = scmp.eq.s32.totalorder %s33, 0
      %p78 = por %p76, %p77
      %s79 = ssub.s32 %s34, %s46
      %s80 = ssub.s32 %s35, %s42
      %s81 = sor.u32 %s79, %s80
      %p82 = scmp.eq.s32.totalorder %s81, 0
      %s84 = sadd.s32 %s83, 1
      %s85 = scalar_select %p82, %s83, %s84
      %p88 = pneg %p82
      %p89 = scmp.eq.s32.totalorder %s27, 1
      %p90 = por %p88, %p89
      %p91 = scmp.ne.s32.totalorder %s83, %s86
      %p92 = scmp.eq.s32.totalorder %s27, 0
      %p93 = por %p91, %p92
      %p94 = scmp.ne.s32.totalorder %s83, %s86
      %p95 = scmp.eq.s32.totalorder %s32, 1
      %p96 = por %p94, %p95
      %p97 = scmp.ne.s32.totalorder %s86, %s87
      %p98 = scmp.eq.s32.totalorder %s32, 0
      %p99 = por %p97, %p98
      %p100 = scmp.ne.s32.totalorder %s86, %s87
      %p101 = scmp.eq.s32.totalorder %s33, 1
      %p102 = por %p100, %p101
      %p104 = scmp.ne.s32.totalorder %s87, %s103
      %p105 = scmp.eq.s32.totalorder %s33, 0
      %p106 = por %p104, %p105
      %s109 = ssub.s32 %s34, %s46
      %s110 = ssub.s32 %s35, %s42
      %s111 = sor.u32 %s109, %s110
      %s112 = ssub.s32 0, 0
      %s113 = sor.u32 %s111, %s112
      %p114 = scmp.eq.s32.totalorder %s113, 0
      %s116 = sadd.s32 %s115, 1
      %s117 = scalar_select %p114, %s115, %s116
      %p120 = pneg %p114
      %p121 = scmp.eq.s32.totalorder %s27, 1
      %p122 = por %p120, %p121
      %p123 = scmp.ne.s32.totalorder %s115, %s118
      %p124 = scmp.eq.s32.totalorder %s27, 0
      %p125 = por %p123, %p124
      %p126 = scmp.ne.s32.totalorder %s115, %s118
      %p127 = scmp.eq.s32.totalorder %s32, 1
      %p128 = por %p126, %p127
      %p129 = scmp.ne.s32.totalorder %s118, %s119
      %p130 = scmp.eq.s32.totalorder %s32, 0
      %p131 = por %p129, %p130
      %p132 = scmp.ne.s32.totalorder %s118, %s119
      %p133 = scmp.eq.s32.totalorder %s33, 1
      %p134 = por %p132, %p133
      %p136 = scmp.ne.s32.totalorder %s119, %s135
      %p137 = scmp.eq.s32.totalorder %s33, 0
      %p138 = por %p136, %p137
      %s139 = ssub.s32 %s34, %s46
      %s140 = ssub.s32 %s35, %s42
      %s141 = sor.u32 %s139, %s140
      %p142 = scmp.eq.s32.totalorder %s141, 0
      %s144 = sadd.s32 %s143, 1
      %s145 = scalar_select %p142, %s143, %s144
      %p148 = pneg %p142
      %p149 = scmp.eq.s32.totalorder %s27, 1
      %p150 = por %p148, %p149
      %p151 = scmp.ne.s32.totalorder %s143, %s146
      %p152 = scmp.eq.s32.totalorder %s27, 0
      %p153 = por %p151, %p152
      %p154 = scmp.ne.s32.totalorder %s143, %s146
      %p155 = scmp.eq.s32.totalorder %s32, 1
      %p156 = por %p154, %p155
      %p157 = scmp.ne.s32.totalorder %s146, %s147
      %p158 = scmp.eq.s32.totalorder %s32, 0
      %p159 = por %p157, %p158
      %p160 = scmp.ne.s32.totalorder %s146, %s147
      %p161 = scmp.eq.s32.totalorder %s33, 1
      %p162 = por %p160, %p161
      %p164 = scmp.ne.s32.totalorder %s147, %s163
      %p165 = scmp.eq.s32.totalorder %s33, 0
      %p166 = por %p164, %p165
      %s169 = ssub.s32 %s34, %s46
      %s170 = ssub.s32 0, 0
      %s171 = sor.u32 %s169, %s170
      %p172 = scmp.eq.s32.totalorder %s171, 0
      %s174 = sadd.s32 %s173, 1
      %s175 = scalar_select %p172, %s173, %s174
      %p178 = pneg %p172
      %p179 = scmp.eq.s32.totalorder %s27, 1
      %p180 = por %p178, %p179
      %p181 = scmp.ne.s32.totalorder %s173, %s176
      %p182 = scmp.eq.s32.totalorder %s27, 0
      %p183 = por %p181, %p182
      %p184 = scmp.ne.s32.totalorder %s173, %s176
      %p185 = scmp.eq.s32.totalorder %s32, 1
      %p186 = por %p184, %p185
      %p187 = scmp.ne.s32.totalorder %s176, %s177
      %p188 = scmp.eq.s32.totalorder %s32, 0
      %p189 = por %p187, %p188
      %p190 = scmp.ne.s32.totalorder %s176, %s177
      %p191 = scmp.eq.s32.totalorder %s33, 1
      %p192 = por %p190, %p191
      %p194 = scmp.ne.s32.totalorder %s177, %s193
      %p195 = scmp.eq.s32.totalorder %s33, 0
      %p196 = por %p194, %p195
      %s197 = ssub.s32 %s34, %s46
      %p198 = scmp.eq.s32.totalorder %s197, 0
      %s200 = sadd.s32 %s199, 1
      %s201 = scalar_select %p198, %s199, %s200
      %p204 = pneg %p198
      %p205 = scmp.eq.s32.totalorder %s27, 1
      %p206 = por %p204, %p205
      %p207 = scmp.ne.s32.totalorder %s199, %s202
      %p208 = scmp.eq.s32.totalorder %s27, 0
      %p209 = por %p207, %p208
      %p210 = scmp.ne.s32.totalorder %s199, %s202
      %p211 = scmp.eq.s32.totalorder %s32, 1
      %p212 = por %p210, %p211
      %p213 = scmp.ne.s32.totalorder %s202, %s203
      %p214 = scmp.eq.s32.totalorder %s32, 0
      %p215 = por %p213, %p214
      %p216 = scmp.ne.s32.totalorder %s202, %s203
      %p217 = scmp.eq.s32.totalorder %s33, 1
      %p218 = por %p216, %p217
      %p220 = scmp.ne.s32.totalorder %s203, %s219
      %p221 = scmp.eq.s32.totalorder %s33, 0
      %p222 = por %p220, %p221
      %s225 = ssub.s32 %s34, %s46
      %s226 = ssub.s32 0, 0
      %s227 = sor.u32 %s225, %s226
      %p228 = scmp.eq.s32.totalorder %s227, 0
      %s230 = sadd.s32 %s229, 1
      %s231 = scalar_select %p228, %s229, %s230
      %p234 = pneg %p228
      %p235 = scmp.eq.s32.totalorder %s27, 1
      %p236 = por %p234, %p235
      %p237 = scmp.ne.s32.totalorder %s229, %s232
      %p238 = scmp.eq.s32.totalorder %s27, 0
      %p239 = por %p237, %p238
      %p240 = scmp.ne.s32.totalorder %s229, %s232
      %p241 = scmp.eq.s32.totalorder %s32, 1
      %p242 = por %p240, %p241
      %p243 = scmp.ne.s32.totalorder %s232, %s233
      %p244 = scmp.eq.s32.totalorder %s32, 0
      %p245 = por %p243, %p244
      %p246 = scmp.ne.s32.totalorder %s232, %s233
      %p247 = scmp.eq.s32.totalorder %s33, 1
      %p248 = por %p246, %p247
      %p250 = scmp.ne.s32.totalorder %s233, %s249
      %p251 = scmp.eq.s32.totalorder %s33, 0
      %p252 = por %p250, %p251
      %s253 = ssub.s32 %s34, %s46
      %p254 = scmp.eq.s32.totalorder %s253, 0
      %s256 = sadd.s32 %s255, 1
      %s257 = scalar_select %p254, %s255, %s256
      %p260 = pneg %p254
      %p261 = scmp.eq.s32.totalorder %s27, 1
      %p262 = por %p260, %p261
      %p263 = scmp.ne.s32.totalorder %s255, %s258
      %p264 = scmp.eq.s32.totalorder %s27, 0
      %p265 = por %p263, %p264
      %p266 = scmp.ne.s32.totalorder %s255, %s258
      %p267 = scmp.eq.s32.totalorder %s32, 1
      %p268 = por %p266, %p267
      %p269 = scmp.ne.s32.totalorder %s258, %s259
      %p270 = scmp.eq.s32.totalorder %s32, 0
      %p271 = por %p269, %p270
      %p272 = scmp.ne.s32.totalorder %s258, %s259
      %p273 = scmp.eq.s32.totalorder %s33, 1
      %p274 = por %p272, %p273
      %p276 = scmp.ne.s32.totalorder %s259, %s275
      %p277 = scmp.eq.s32.totalorder %s33, 0
      %p278 = por %p276, %p277
      %s279 = ssub.s32 %s34, %s46
      %s280 = ssub.s32 %s35, %s42
      %s281 = sor.u32 %s279, %s280
      %p282 = scmp.eq.s32.totalorder %s281, 0
      %s284 = sadd.s32 %s283, 1
      %s285 = scalar_select %p282, %s283, %s284
      %p288 = pneg %p282
      %p289 = scmp.eq.s32.totalorder %s27, 1
      %p290 = por %p288, %p289
      %p291 = scmp.ne.s32.totalorder %s283, %s286
      %p292 = scmp.eq.s32.totalorder %s27, 0
      %p293 = por %p291, %p292
      %p294 = scmp.ne.s32.totalorder %s283, %s286
      %p295 = scmp.eq.s32.totalorder %s32, 1
      %p296 = por %p294, %p295
      %p297 = scmp.ne.s32.totalorder %s286, %s287
      %p298 = scmp.eq.s32.totalorder %s32, 0
      %p299 = por %p297, %p298
      %p300 = scmp.ne.s32.totalorder %s286, %s287
      %p301 = scmp.eq.s32.totalorder %s33, 1
      %p302 = por %p300, %p301
      %p304 = scmp.ne.s32.totalorder %s287, %s303
      %p305 = scmp.eq.s32.totalorder %s33, 0
      %p306 = por %p304, %p305
      %s307 = ssub.s32 %s34, %s46
      %s308 = ssub.s32 %s35, %s42
      %s309 = sor.u32 %s307, %s308
      %p310 = scmp.eq.s32.totalorder %s309, 0
      %s312 = sadd.s32 %s311, 1
      %s313 = scalar_select %p310, %s311, %s312
      %p316 = pneg %p310
      %p317 = scmp.eq.s32.totalorder %s27, 1
      %p318 = por %p316, %p317
      %p319 = scmp.ne.s32.totalorder %s311, %s314
      %p320 = scmp.eq.s32.totalorder %s27, 0
      %p321 = por %p319, %p320
      %p322 = scmp.ne.s32.totalorder %s311, %s314
      %p323 = scmp.eq.s32.totalorder %s32, 1
      %p324 = por %p322, %p323
      %p325 = scmp.ne.s32.totalorder %s314, %s315
      %p326 = scmp.eq.s32.totalorder %s32, 0
      %p327 = por %p325, %p326
      %p328 = scmp.ne.s32.totalorder %s314, %s315
      %p329 = scmp.eq.s32.totalorder %s33, 1
      %p330 = por %p328, %p329
      %p332 = scmp.ne.s32.totalorder %s315, %s331
      %p333 = scmp.eq.s32.totalorder %s33, 0
      %p334 = por %p332, %p333
      %p335 = scmp.le.s32.totalorder 1, %s27
      %p336 = scmp.lt.s32.totalorder %s27, 3
      %p337 = pnand %p335, %p336
      %p338 = pneg %p337
      // Predicated region
      $region9: #{complex_sdpa.2} parent=5 // pred_check
        _
      $region10: #{complex_sdpa.2} parent=5 // pred_check_branch
        %340 = sbr.rel (%p337) target = $region12
      $region11: #{complex_sdpa.2} parent=5 // pred_region
        %s341 = ssub.s32 %s27, 1
      $region12: #{complex_sdpa.2} parent=5 // pred_fallthru
        _
      %p342 = scmp.lt.s32.totalorder %s27, 2
      // Predicated region
      $region13: #{complex_sdpa.2} parent=5 // pred_check
        %p343 = pneg %p342
      $region14: #{complex_sdpa.2} parent=5 // pred_check_branch
        %345 = sbr.rel (%p343) target = $region16
      $region15: #{complex_sdpa.2} parent=5 // pred_region
        // Predicated region
        $region17: #{complex_sdpa.2} parent=15 // pred_check
          %p346 = pneg %p65
        $region18: #{complex_sdpa.2} parent=15 // pred_check_branch
          %348 = sbr.rel (%p346) target = $region20
        $region19: #{complex_sdpa.2} parent=15 // pred_region
          %s350 = ssub.s32 1, 0
          %s351 = smul.u32 8, %s350
          %p352 = scmp.lt.s32.totalorder %s34, 1
          %s353 = scalar_select %p352, %s34, 1
          %p354 = scmp.lt.s32.totalorder %s35, 0
          %s355 = scalar_select %p354, %s35, 0
          %p356 = scmp.lt.s32.totalorder 0, 0
          %s357 = scalar_select %p356, 0, 0
          %s358 = sadd.s32 %s357, %s355
          %s359 = sadd.s32 %s358, %s353
          %s360 = smul.addr %s359, 8
          %s361 = scalar_lea.vmem %s0, %s360
          %s363 = ssub.s32 1, 0
          %s364 = smul.u32 8, %s363
        $region20: #{complex_sdpa.2} parent=15 // pred_fallthru
          _
        // Predicated region
        $region21: #{complex_sdpa.2} parent=15 // pred_check
          %p365 = pneg %p93
        $region22: #{complex_sdpa.2} parent=15 // pred_check_branch
          %367 = sbr.rel (%p365) target = $region24
        $region23: #{complex_sdpa.2} parent=15 // pred_region
          %p368 = scmp.lt.s32.totalorder %s34, 1
          %s369 = scalar_select %p368, %s34, 1
          %p370 = scmp.lt.s32.totalorder %s35, 0
          %s371 = scalar_select %p370, %s35, 0
          %s372 = sadd.s32 %s371, %s369
          %s373 = smul.addr %s372, 8
          %s374 = scalar_lea.vmem %s2, %s373
        $region24: #{complex_sdpa.2} parent=15 // pred_fallthru
          _
        // Predicated region
        $region25: #{complex_sdpa.2} parent=15 // pred_check
          %p375 = pneg %p125
        $region26: #{complex_sdpa.2} parent=15 // pred_check_branch
          %377 = sbr.rel (%p375) target = $region28
        $region27: #{complex_sdpa.2} parent=15 // pred_region
          %s379 = ssub.s32 1, 0
          %s380 = smul.u32 8, %s379
          %p381 = scmp.lt.s32.totalorder %s34, 1
          %s382 = scalar_select %p381, %s34, 1
          %p383 = scmp.lt.s32.totalorder %s35, 0
          %s384 = scalar_select %p383, %s35, 0
          %p385 = scmp.lt.s32.totalorder 0, 0
          %s386 = scalar_select %p385, 0, 0
          %s387 = sadd.s32 %s386, %s384
          %s388 = sadd.s32 %s387, %s382
          %s389 = smul.addr %s388, 8
          %s390 = scalar_lea.vmem %s3, %s389
          %s392 = ssub.s32 1, 0
          %s393 = smul.u32 8, %s392
        $region28: #{complex_sdpa.2} parent=15 // pred_fallthru
          _
        // Predicated region
        $region29: #{complex_sdpa.2} parent=15 // pred_check
          %p394 = pneg %p153
        $region30: #{complex_sdpa.2} parent=15 // pred_check_branch
          %396 = sbr.rel (%p394) target = $region32
        $region31: #{complex_sdpa.2} parent=15 // pred_region
          %p397 = scmp.lt.s32.totalorder %s34, 1
          %s398 = scalar_select %p397, %s34, 1
          %p399 = scmp.lt.s32.totalorder %s35, 0
          %s400 = scalar_select %p399, %s35, 0
          %s401 = sadd.s32 %s400, %s398
          %s402 = smul.addr %s401, 8
          %s403 = scalar_lea.vmem %s0, %s402
        $region32: #{complex_sdpa.2} parent=15 // pred_fallthru
          _
        // Predicated region
        $region33: #{complex_sdpa.2} parent=15 // pred_check
          %p404 = pneg %p183
        $region34: #{complex_sdpa.2} parent=15 // pred_check_branch
          %406 = sbr.rel (%p404) target = $region36
        $region35: #{complex_sdpa.2} parent=15 // pred_region
          %s408 = ssub.s32 1, 0
          %s409 = smul.u32 8, %s408
          %p410 = scmp.lt.s32.totalorder %s34, 1
          %s411 = scalar_select %p410, %s34, 1
          %p412 = scmp.lt.s32.totalorder 0, 0
          %s413 = scalar_select %p412, 0, 0
          %s414 = sadd.s32 %s413, %s411
          %s415 = smul.addr %s414, 8
          %s416 = scalar_lea.vmem %s4, %s415
          %s418 = ssub.s32 1, 0
          %s419 = smul.u32 8, %s418
        $region36: #{complex_sdpa.2} parent=15 // pred_fallthru
          _
        // Predicated region
        $region37: #{complex_sdpa.2} parent=15 // pred_check
          %p420 = pneg %p209
        $region38: #{complex_sdpa.2} parent=15 // pred_check_branch
          %422 = sbr.rel (%p420) target = $region40
        $region39: #{complex_sdpa.2} parent=15 // pred_region
          %p423 = scmp.lt.s32.totalorder %s34, 1
          %s424 = scalar_select %p423, %s34, 1
          %s425 = smul.addr %s424, 8
          %s426 = scalar_lea.vmem %s5, %s425
        $region40: #{complex_sdpa.2} parent=15 // pred_fallthru
          _
        // Predicated region
        $region41: #{complex_sdpa.2} parent=15 // pred_check
          %p427 = pneg %p239
        $region42: #{complex_sdpa.2} parent=15 // pred_check_branch
          %429 = sbr.rel (%p427) target = $region44
        $region43: #{complex_sdpa.2} parent=15 // pred_region
          %s431 = ssub.s32 1, 0
          %s432 = smul.u32 8, %s431
          %p433 = scmp.lt.s32.totalorder %s34, 1
          %s434 = scalar_select %p433, %s34, 1
          %p435 = scmp.lt.s32.totalorder 0, 0
          %s436 = scalar_select %p435, 0, 0
          %s437 = sadd.s32 %s436, %s434
          %s438 = smul.addr %s437, 8
          %s439 = scalar_lea.vmem %s6, %s438
          %s441 = ssub.s32 1, 0
          %s442 = smul.u32 8, %s441
        $region44: #{complex_sdpa.2} parent=15 // pred_fallthru
          _
        // Predicated region
        $region45: #{complex_sdpa.2} parent=15 // pred_check
          %p443 = pneg %p265
        $region46: #{complex_sdpa.2} parent=15 // pred_check_branch
          %445 = sbr.rel (%p443) target = $region48
        $region47: #{complex_sdpa.2} parent=15 // pred_region
          %p446 = scmp.lt.s32.totalorder %s34, 1
          %s447 = scalar_select %p446, %s34, 1
          %s448 = smul.addr %s447, 8
          %s449 = scalar_lea.vmem %s7, %s448
        $region48: #{complex_sdpa.2} parent=15 // pred_fallthru
          _
      $region16: #{complex_sdpa.2} parent=5 // pred_fallthru
        _
      %p450 = scmp.le.s32.totalorder 1, %s27
      %p451 = scmp.lt.s32.totalorder %s27, 3
      %p452 = pnand %p450, %p451
      %p453 = pneg %p452
      // Predicated region
      $region49: #{complex_sdpa.2} parent=5 // pred_check
        _
      $region50: #{complex_sdpa.2} parent=5 // pred_check_branch
        %455 = sbr.rel (%p452) target = $region52
      $region51: #{complex_sdpa.2} parent=5 // pred_region
        #allocation44 [shape = 'u8[4096]{0}', space=vmem, size = 0x1000, dematerialized = true, scoped, tag = 'FusionAdapter Buffer %fusion.1 = f32[2,8,64]{2,1,0:T(8,128)} fusion(%param_0.22, %param_1.25, %param_2.10), kind=kLoop, calls=%fused_computation.1.clone, metadata={op_name="jit(complex_sdpa)/concatenate" stack_frame_id=12}']
        #allocation45 [shape = 'u8[4096]{0}', space=vmem, size = 0x1000, dematerialized = true, scoped, tag = 'FusionAdapter Buffer %fusion.4 = f32[2,8,64]{2,1,0:T(8,128)} fusion(%param_3.5, %param_1.25, %param_0.22), kind=kLoop, calls=%fused_computation.4.clone, metadata={op_name="jit(complex_sdpa)/concatenate" stack_frame_id=14}']
        #allocation46 [shape = 'u8[4096]{0}', space=vmem, size = 0x1000, dematerialized = true, scoped, tag = 'FusionAdapter Buffer %fusion.7 = f32[2,8,64]{2,1,0:T(8,128)} fusion(%param_4.5, %param_1.25, %param_5.6), kind=kLoop, calls=%fused_computation.7.clone, metadata={op_name="jit(complex_sdpa)/concatenate" stack_frame_id=17}']
        #allocation47 [shape = 'u8[4096]{0}', space=vmem, size = 0x1000, dematerialized = true, scoped, tag = 'FusionAdapter Buffer %fusion.10 = f32[2,8,64]{2,1,0:T(8,128)} fusion(%param_6.6, %param_1.25, %param_7.2), kind=kLoop, calls=%fused_computation.10.clone, metadata={op_name="jit(complex_sdpa)/concatenate" stack_frame_id=11}']
        %s456 = ssub.s32 %s27, 1
        %s458 = ssub.s32 1, 0
        %s459 = smul.u32 8, %s458
        %p460 = scmp.lt.s32.totalorder %s36, 1
        %s461 = scalar_select %p460, %s36, 1
        %p462 = scmp.lt.s32.totalorder %s37, 0
        %s463 = scalar_select %p462, %s37, 0
        %p464 = scmp.lt.s32.totalorder 0, 0
        %s465 = scalar_select %p464, 0, 0
        %s466 = sadd.s32 %s465, %s463
        %s467 = sadd.s32 %s466, %s461
        %s468 = smul.addr %s467, 8
        %s469 = scalar_lea.vmem %s0, %s468
        %p470 = pneg %p71
        %p471 = pneg %p68
        %p472 = scmp.lt.s32.totalorder %s36, 1
        %s473 = scalar_select %p472, %s36, 1
        %p474 = scmp.lt.s32.totalorder %s37, 0
        %s475 = scalar_select %p474, %s37, 0
        %s476 = sadd.s32 %s475, %s473
        %s477 = smul.addr %s476, 8
        %s478 = scalar_lea.vmem %s2, %s477
        %p479 = pneg %p99
        %p480 = pneg %p96
        %s482 = ssub.s32 1, 0
        %s483 = smul.u32 8, %s482
        %p484 = scmp.lt.s32.totalorder %s36, 1
        %s485 = scalar_select %p484, %s36, 1
        %p486 = scmp.lt.s32.totalorder %s37, 0
        %s487 = scalar_select %p486, %s37, 0
        %p488 = scmp.lt.s32.totalorder 0, 0
        %s489 = scalar_select %p488, 0, 0
        %s490 = sadd.s32 %s489, %s487
        %s491 = sadd.s32 %s490, %s485
        %s492 = smul.addr %s491, 8
        %s493 = scalar_lea.vmem %s3, %s492
        %p494 = pneg %p131
        %p495 = pneg %p128
        %p496 = scmp.lt.s32.totalorder %s36, 1
        %s497 = scalar_select %p496, %s36, 1
        %p498 = scmp.lt.s32.totalorder %s37, 0
        %s499 = scalar_select %p498, %s37, 0
        %s500 = sadd.s32 %s499, %s497
        %s501 = smul.addr %s500, 8
        %s502 = scalar_lea.vmem %s0, %s501
        %p503 = pneg %p159
        %p504 = pneg %p156
        %s506 = ssub.s32 1, 0
        %s507 = smul.u32 8, %s506
        %p508 = scmp.lt.s32.totalorder %s36, 1
        %s509 = scalar_select %p508, %s36, 1
        %p510 = scmp.lt.s32.totalorder 0, 0
        %s511 = scalar_select %p510, 0, 0
        %s512 = sadd.s32 %s511, %s509
        %s513 = smul.addr %s512, 8
        %s514 = scalar_lea.vmem %s4, %s513
        %p515 = pneg %p189
        %p516 = pneg %p186
        %p517 = scmp.lt.s32.totalorder %s36, 1
        %s518 = scalar_select %p517, %s36, 1
        %s519 = smul.addr %s518, 8
        %s520 = scalar_lea.vmem %s5, %s519
        %p521 = pneg %p215
        %p522 = pneg %p212
        %s524 = ssub.s32 1, 0
        %s525 = smul.u32 8, %s524
        %p526 = scmp.lt.s32.totalorder %s36, 1
        %s527 = scalar_select %p526, %s36, 1
        %p528 = scmp.lt.s32.totalorder 0, 0
        %s529 = scalar_select %p528, 0, 0
        %s530 = sadd.s32 %s529, %s527
        %s531 = smul.addr %s530, 8
        %s532 = scalar_lea.vmem %s6, %s531
        %p533 = pneg %p245
        %p534 = pneg %p242
        %p535 = scmp.lt.s32.totalorder %s36, 1
        %s536 = scalar_select %p535, %s36, 1
        %s537 = smul.addr %s536, 8
        %s538 = scalar_lea.vmem %s7, %s537
        %p539 = pneg %p271
        %p540 = pneg %p268
        %p541 = pneg %p299
        %p542 = pneg %p296
        %p543 = scmp.lt.s32.totalorder %s36, 1
        %s544 = scalar_select %p543, %s36, 1
        %p545 = scmp.lt.s32.totalorder %s37, 0
        %s546 = scalar_select %p545, %s37, 0
        %s547 = sadd.s32 %s546, %s544
        %s548 = smul.addr %s547, 8
        %s549 = scalar_lea.vmem %s8, %s548
        %p550 = pneg %p327
        %p551 = pneg %p324
        %s552 = sand.u32 %s314, 1
        %s553 = scalar_lea.sflag [#allocation43], %s552
        %s554 = sand.u32 %s314, 1
        %s555 = smul.addr %s554, 8
        %s556 = scalar_lea.vmem [#allocation42], %s555
        %s558 = ssub.s32 1, 0
        %s559 = smul.u32 8, %s558
        %p560 = scmp.lt.s32.totalorder %s36, 1
        %s561 = scalar_select %p560, %s36, 1
        %p562 = scmp.lt.s32.totalorder %s37, 0
        %s563 = scalar_select %p562, %s37, 0
        %p564 = scmp.lt.s32.totalorder 0, 0
        %s565 = scalar_select %p564, 0, 0
        %s566 = sadd.s32 %s565, %s563
        %s567 = sadd.s32 %s566, %s561
        %s568 = smul.addr %s567, 8
        %s569 = scalar_lea.vmem %s0, %s568
        %s571 = ssub.s32 1, 0
        %s572 = smul.u32 8, %s571
        %p573 = scmp.lt.s32.totalorder %s36, 1
        %s574 = scalar_select %p573, %s36, 1
        %p575 = scmp.lt.s32.totalorder %s37, 0
        %s576 = scalar_select %p575, %s37, 0
        %s577 = sadd.s32 %s576, %s574
        %s578 = smul.addr %s577, 8
        %s579 = scalar_lea.vmem %s2, %s578
        %s581 = ssub.s32 1, 0
        %s582 = smul.u32 8, %s581
        %p583 = scmp.lt.s32.totalorder %s36, 1
        %s584 = scalar_select %p583, %s36, 1
        %p585 = scmp.lt.s32.totalorder %s37, 0
        %s586 = scalar_select %p585, %s37, 0
        %p587 = scmp.lt.s32.totalorder 0, 0
        %s588 = scalar_select %p587, 0, 0
        %s589 = sadd.s32 %s588, %s586
        %s590 = sadd.s32 %s589, %s584
        %s591 = smul.addr %s590, 8
        %s592 = scalar_lea.vmem %s3, %s591
        %s594 = ssub.s32 1, 0
        %s595 = smul.u32 8, %s594
        %p596 = scmp.lt.s32.totalorder %s36, 1
        %s597 = scalar_select %p596, %s36, 1
        %p598 = scmp.lt.s32.totalorder %s37, 0
        %s599 = scalar_select %p598, %s37, 0
        %s600 = sadd.s32 %s599, %s597
        %s601 = smul.addr %s600, 8
        %s602 = scalar_lea.vmem %s0, %s601
        %s604 = ssub.s32 1, 0
        %s605 = smul.u32 8, %s604
        %p606 = scmp.lt.s32.totalorder %s36, 1
        %s607 = scalar_select %p606, %s36, 1
        %p608 = scmp.lt.s32.totalorder 0, 0
        %s609 = scalar_select %p608, 0, 0
        %s610 = sadd.s32 %s609, %s607
        %s611 = smul.addr %s610, 8
        %s612 = scalar_lea.vmem %s4, %s611
        %s614 = ssub.s32 1, 0
        %s615 = smul.u32 8, %s614
        %p616 = scmp.lt.s32.totalorder %s36, 1
        %s617 = scalar_select %p616, %s36, 1
        %s618 = smul.addr %s617, 8
        %s619 = scalar_lea.vmem %s5, %s618
        %s621 = ssub.s32 1, 0
        %s622 = smul.u32 8, %s621
        %p623 = scmp.lt.s32.totalorder %s36, 1
        %s624 = scalar_select %p623, %s36, 1
        %p625 = scmp.lt.s32.totalorder 0, 0
        %s626 = scalar_select %p625, 0, 0
        %s627 = sadd.s32 %s626, %s624
        %s628 = smul.addr %s627, 8
        %s629 = scalar_lea.vmem %s6, %s628
        %s631 = ssub.s32 1, 0
        %s632 = smul.u32 8, %s631
        %p633 = scmp.lt.s32.totalorder %s36, 1
        %s634 = scalar_select %p633, %s36, 1
        %s635 = smul.addr %s634, 8
        %s636 = scalar_lea.vmem %s7, %s635
        %p637 = scmp.lt.s32.totalorder %s36, 1
        %s638 = scalar_select %p637, %s36, 1
        %p639 = scmp.lt.s32.totalorder %s37, 0
        %s640 = scalar_select %p639, %s37, 0
        %s641 = sadd.s32 %s640, %s638
        %s642 = smul.addr %s641, 8
        %s643 = scalar_lea.vmem %s8, %s642
        %s644 = ssub.s32 0, 0
        %p645 = scmp.lt.s32.totalorder %s644, 0
        %s646 = scalar_select %p645, 0, 255
        %v647 = vld [vmem:[%s569] sm:%s646]
        %v648 = vlaneseq
        %v649 = vand.u32 %v648, 127
        %v650 = vadd.s32 %v649, 128
        %vm651 = vcmp.lt.s32.totalorder %v650, 160
        %v652 = vsel %vm651, %v647, %v15
        %v653 = vlaneseq
        %v654 = vand.u32 %v653, 127
        %vm655 = vcmp.lt.s32.totalorder %v654, 96
        %v656 = vsel %vm655, %v652, %v15
        %657 = vrot.lane.b32.xlu0 %v656, 32
        %v658 = vpop.permute.xlu0 %657
        %v659 = vld [vmem:[%s579] sm:$0xff]
        %v660 = vlaneseq
        %v661 = vand.u32 %v660, 127
        %vm663 = vcmp.lt.s32.totalorder %v661, 32
        %v664 = vsel %vm663, %v659, %v16
        %665 = xla_tuple %v664, %v658
        %666 = xla_tuple %665
        %v667 = vmax.f32 %v664, %v658
        %668 = xla_tuple %v667
        %s670 = ssub.s32 256, 1
        %671 = vst [vmem:[#allocation44] sm:%s670] %v667
        %s672 = ssub.s32 0, 0
        %p673 = scmp.lt.s32.totalorder %s672, 0
        %s674 = scalar_select %p673, 0, 255
        %v675 = vld [vmem:[%s592] sm:%s674]
        %v676 = vlaneseq
        %v677 = vand.u32 %v676, 127
        %v678 = vadd.s32 %v677, 128
        %vm679 = vcmp.lt.s32.totalorder %v678, 160
        %v680 = vsel %vm679, %v675, %v17
        %v681 = vlaneseq
        %v682 = vand.u32 %v681, 127
        %vm683 = vcmp.lt.s32.totalorder %v682, 96
        %v684 = vsel %vm683, %v680, %v17
        %685 = vrot.lane.b32.xlu0 %v684, 32
        %v686 = vpop.permute.xlu0 %685
        %v687 = vld [vmem:[%s602] sm:$0xff]
        %v688 = vlaneseq
        %v689 = vand.u32 %v688, 127
        %vm691 = vcmp.lt.s32.totalorder %v689, 32
        %v692 = vsel %vm691, %v687, %v18
        %693 = xla_tuple %v692, %v686
        %694 = xla_tuple %693
        %v695 = vmax.f32 %v692, %v686
        %696 = xla_tuple %v695
        %s698 = ssub.s32 256, 1
        %699 = vst [vmem:[#allocation45] sm:%s698] %v695
        %s700 = ssub.s32 0, 0
        %p701 = scmp.lt.s32.totalorder %s700, 0
        %s702 = scalar_select %p701, 0, 255
        %v703 = vld [vmem:[%s612] sm:%s702]
        %v704 = vlaneseq
        %v705 = vand.u32 %v704, 127
        %v706 = vadd.s32 %v705, 128
        %vm707 = vcmp.lt.s32.totalorder %v706, 160
        %v708 = vsel %vm707, %v703, %v19
        %v709 = vlaneseq
        %v710 = vand.u32 %v709, 127
        %vm711 = vcmp.lt.s32.totalorder %v710, 96
        %v712 = vsel %vm711, %v708, %v19
        %713 = vrot.lane.b32.xlu0 %v712, 32
        %v714 = vpop.permute.xlu0 %713
        %v715 = vld [vmem:[%s619] sm:$0xff]
        %v716 = vlaneseq
        %v717 = vand.u32 %v716, 127
        %vm719 = vcmp.lt.s32.totalorder %v717, 32
        %v720 = vsel %vm719, %v715, %v20
        %721 = xla_tuple %v720, %v714
        %722 = xla_tuple %721
        %v723 = vmax.f32 %v720, %v714
        %724 = xla_tuple %v723
        %s726 = ssub.s32 256, 1
        %727 = vst [vmem:[#allocation46] sm:%s726] %v723
        %s728 = ssub.s32 0, 0
        %p729 = scmp.lt.s32.totalorder %s728, 0
        %s730 = scalar_select %p729, 0, 255
        %v731 = vld [vmem:[%s629] sm:%s730]
        %v732 = vlaneseq
        %v733 = vand.u32 %v732, 127
        %v734 = vadd.s32 %v733, 128
        %vm735 = vcmp.lt.s32.totalorder %v734, 160
        %v736 = vsel %vm735, %v731, %v21
        %v737 = vlaneseq
        %v738 = vand.u32 %v737, 127
        %vm739 = vcmp.lt.s32.totalorder %v738, 96
        %v740 = vsel %vm739, %v736, %v21
        %741 = vrot.lane.b32.xlu0 %v740, 32
        %v742 = vpop.permute.xlu0 %741
        %v743 = vld [vmem:[%s636] sm:$0xff]
        %v744 = vlaneseq
        %v745 = vand.u32 %v744, 127
        %vm747 = vcmp.lt.s32.totalorder %v745, 32
        %v748 = vsel %vm747, %v743, %v22
        %749 = xla_tuple %v748, %v742
        %750 = xla_tuple %749
        %v751 = vmax.f32 %v748, %v742
        %752 = xla_tuple %v751
        %s754 = ssub.s32 256, 1
        %755 = vst [vmem:[#allocation47] sm:%s754] %v751
        %v756 = vld [vmem:[#allocation44] sm:$0xff]
        %v757 = vld [vmem:[#allocation46] sm:$0xff]
        %vm758 = vcmask 523264
        %v760 = vsel %vm758, %v756, 0
        %v763 = vsel %vm758, %v757, 0
        %765 = vmatpush.xpose.msra.mxu0 0.0
        %766 = vmatpush.xpose.msra.mxu0 0.0
        %767 = vmatpush.xpose.msra.mxu0 0.0
        %768 = vmatpush.xpose.msra.mxu0 0.0
        %769 = vmatpush.xpose.msra.mxu0 0.0
        %770 = vmatpush.xpose.msra.mxu0 0.0
        %771 = vmatpush.xpose.msra.mxu0 0.0
        %772 = vmatpush.xpose.msra.mxu0 0.0
        %773 = vmatpush.xpose.msra.mxu0 0.0
        %774 = vmatpush.xpose.msra.mxu0 0.0
        %775 = vmatpush.xpose.msra.mxu0 0.0
        %776 = vmatpush.xpose.msra.mxu0 0.0
        %777 = vmatpush.xpose.msra.mxu0 0.0
        %778 = vmatpush.xpose.msra.mxu0 0.0
        %779 = vmatpush.xpose.msra.mxu0 0.0
        %780 = vmatpush.xpose.msra.mxu0 %v763
        %781 = vmatmul.f32.gmra.mxu0 %v760
        %v782 = vpop.f32.mrf.mxu0
        %v783 = vadd.f32 0.0, %v782
        %784 = vdwg.mxu0
        %v785 = vld [vmem:[#allocation45] sm:$0xff]
        %v787 = vsel %vm758, %v785, 0
        %789 = vmatpush.xpose.msra.mxu0 0.0
        %790 = vmatpush.xpose.msra.mxu0 0.0
        %791 = vmatpush.xpose.msra.mxu0 0.0
        %792 = vmatpush.xpose.msra.mxu0 0.0
        %793 = vmatpush.xpose.msra.mxu0 0.0
        %794 = vmatpush.xpose.msra.mxu0 0.0
        %795 = vmatpush.xpose.msra.mxu0 0.0
        %796 = vmatpush.xpose.msra.mxu0 0.0
        %797 = vmatpush.xpose.msra.mxu0 0.0
        %798 = vmatpush.xpose.msra.mxu0 0.0
        %799 = vmatpush.xpose.msra.mxu0 0.0
        %800 = vmatpush.xpose.msra.mxu0 0.0
        %801 = vmatpush.xpose.msra.mxu0 0.0
        %802 = vmatpush.xpose.msra.mxu0 0.0
        %803 = vmatpush.xpose.msra.mxu0 0.0
        %804 = vmatpush.xpose.msra.mxu0 %v763
        %805 = vmatmul.f32.gmra.mxu0 %v787
        %v806 = vpop.f32.mrf.mxu0
        %v807 = vadd.f32 0.0, %v806
        %808 = vdwg.mxu0
        %v809 = vmul.f32 %v783, %v783
        %v810 = vmul.f32 %v807, %v807
        %v811 = vadd.f32 %v809, %v810
        %v812 = vrsqrt.pop %v811
        %v813 = vmul.f32 %v812, %v811
        %v814 = vmul.f32 %v813, %v812
        %v815 = vmul.f32 0.5, %v814
        %v816 = vsub.f32 1.5, %v815
        %v817 = vmul.f32 %v812, %v816
        %v818 = vmul.f32 %v811, %v817
        %vm819 = vcmp.eq.f32.partialorder %v811, inf
        %v820 = vsel %vm819, %v811, %v818
        %vm821 = vcmp.eq.f32.partialorder %v811, 0.0
        %v822 = vand.u32 %v811, 2147483648
        %v823 = vsel %vm821, %v822, %v820
        %vm824 = vcmask 64512
        %v825 = vsel %vm824, %v823, -inf
        %826 = vmax.xlane.f32.xlu0 %v825
        %v827 = vpop.xlane.xlu0 %826
        %v828 = vsub.f32 %v823, %v827
        %v829 = vmul.f32 %v828, 1.442695
        %v830 = vpow.pop %v829
        %v831 = vsel %vm824, %v830, 0.0
        %832 = vadd.xlane.f32.xlu0 %v831
        %v833 = vpop.xlane.xlu0 %832
        %v834 = vrcp.pop %v833
        %v835 = vmul.f32 %v833, %v834
        %v836 = vsub.f32 2.0, %v835
        %v837 = vmul.f32 %v834, %v836
        %v838 = vmul.f32 %v830, %v837
        %839 = vst.msk [vmem:[%s556] sm:$0xff] %vm824, %v838
        %v840 = vld [vmem:[#allocation47] sm:$0xff]
        %v842 = vsel %vm824, %v838, 0
        %844 = vmatpush.msra.mxu0 0.0
        %845 = vmatpush.msra.mxu0 0.0
        %846 = vmatpush.msra.mxu0 0.0
        %847 = vmatpush.msra.mxu0 0.0
        %848 = vmatpush.msra.mxu0 0.0
        %849 = vmatpush.msra.mxu0 0.0
        %850 = vmatpush.msra.mxu0 0.0
        %851 = vmatpush.msra.mxu0 0.0
        %852 = vmatpush.msra.mxu0 0.0
        %853 = vmatpush.msra.mxu0 0.0
        %854 = vmatpush.msra.mxu0 0.0
        %855 = vmatpush.msra.mxu0 0.0
        %856 = vmatpush.msra.mxu0 0.0
        %857 = vmatpush.msra.mxu0 0.0
        %858 = vmatpush.msra.mxu0 0.0
        %859 = vmatpush.msra.mxu0 %v840
        %860 = vmatmul.f32.gmra.mxu0 %v842
        %v861 = vpop.f32.mrf.mxu0
        %v862 = vadd.f32 0.0, %v861
        %863 = vdwg.mxu0
        %864 = vst.msk [vmem:[%s643] sm:$0xff] %vm758, %v862
        %p865 = scmp.lt.s32.totalorder %s36, 1
        %s866 = scalar_select %p865, %s36, 1
        %p867 = scmp.lt.s32.totalorder %s37, 0
        %s868 = scalar_select %p867, %s37, 0
        %s869 = sadd.s32 %s868, %s866
        %s870 = smul.addr %s869, 8
        %s871 = scalar_lea.vmem %s8, %s870
        %s872 = sand.u32 %s314, 1
        %s873 = scalar_lea.sflag [#allocation43], %s872
        %s874 = sand.u32 %s314, 1
        %s875 = smul.addr %s874, 8
        %s876 = scalar_lea.vmem [#allocation42], %s875
        // Predicated region
        $region53: #{complex_sdpa.2} parent=51 // pred_check
          %p877 = pneg %p296
        $region54: #{complex_sdpa.2} parent=51 // pred_check_branch
          %879 = sbr.rel (%p877) target = $region56
        $region55: #{complex_sdpa.2} parent=51 // pred_region
          _
        $region56: #{complex_sdpa.2} parent=51 // pred_fallthru
          _
        // Predicated region
        $region57: #{complex_sdpa.2} parent=51 // pred_check
          %p880 = pneg %p324
        $region58: #{complex_sdpa.2} parent=51 // pred_check_branch
          %882 = sbr.rel (%p880) target = $region60
        $region59: #{complex_sdpa.2} parent=51 // pred_region
          %884 = vsyncadd %s873, 0
          %s885 = sadd.s32 %s37, %s36
          %s886 = smul.addr %s885, 8
          %s887 = scalar_lea.hbm %s9, %s886
          %s889 = sshll.u32 %s876, 4
          %s890 = int_to_ptr.vmem [resolvable:$true] %s889
          %s891 = sshll.u32 %s887, 4
          %s892 = int_to_ptr.hbm [resolvable:$true] %s891
          %894 = dma.vmem_to_hbm [thread:$0]  %s890, 128, %s892, %s873
        $region60: #{complex_sdpa.2} parent=51 // pred_fallthru
          _
      $region52: #{complex_sdpa.2} parent=5 // pred_fallthru
        _
      %p895 = scmp.le.s32.totalorder 2, %s27
      // Predicated region
      $region61: #{complex_sdpa.2} parent=5 // pred_check
        %p896 = pneg %p895
      $region62: #{complex_sdpa.2} parent=5 // pred_check_branch
        %898 = sbr.rel (%p896) target = $region64
      $region63: #{complex_sdpa.2} parent=5 // pred_region
        %s899 = ssub.s32 %s27, 2
        // Predicated region
        $region65: #{complex_sdpa.2} parent=63 // pred_check
          %p900 = pneg %p302
        $region66: #{complex_sdpa.2} parent=63 // pred_check_branch
          %902 = sbr.rel (%p900) target = $region68
        $region67: #{complex_sdpa.2} parent=63 // pred_region
          %p903 = scmp.lt.s32.totalorder %s38, 1
          %s904 = scalar_select %p903, %s38, 1
          %p905 = scmp.lt.s32.totalorder %s39, 0
          %s906 = scalar_select %p905, %s39, 0
          %s907 = sadd.s32 %s906, %s904
          %s908 = smul.addr %s907, 8
          %s909 = scalar_lea.vmem %s8, %s908
        $region68: #{complex_sdpa.2} parent=63 // pred_fallthru
          _
        // Predicated region
        $region69: #{complex_sdpa.2} parent=63 // pred_check
          %p910 = pneg %p330
        $region70: #{complex_sdpa.2} parent=63 // pred_check_branch
          %912 = sbr.rel (%p910) target = $region72
        $region71: #{complex_sdpa.2} parent=63 // pred_region
          %s913 = sand.u32 %s315, 1
          %s914 = scalar_lea.sflag [#allocation43], %s913
          %s915 = sand.u32 %s315, 1
          %s916 = smul.addr %s915, 8
          %s917 = scalar_lea.vmem [#allocation42], %s916
          %919 = dma.done %s914, 128
        $region72: #{complex_sdpa.2} parent=63 // pred_fallthru
          _
      $region64: #{complex_sdpa.2} parent=5 // pred_fallthru
        _
    $region6: #{complex_sdpa.2} parent=1 // loop_footer
      %s31 = sadd.s32 1, %s27
    $region7: #{complex_sdpa.2} parent=1 // loop_footer_branch
      %26 = sbr.rel target = $region3
    $region8: #{complex_sdpa.2} parent=1 // loop_exit
      _
    %920 = vsyncpa [#allocation43], 1
    %s921 = scalar_lea.sflag [#allocation43], 1
    %922 = vsyncpa %s921, 1

</llo_original>
